<compile_context>
chip_gen: v6e
topology: v6e:2x2x1
jax: 0.10.0
libtpu: 0.0.40
codegen_flags: <defaults>
</compile_context>

<pallas_src>
import jax
import jax.numpy as jnp
from jax.experimental import pallas as pl
from jax.experimental.pallas import tpu as pltpu

NEG_SLOPE = 0.01   # nn.LeakyReLU default
LN_EPS = 1e-5      # nn.LayerNorm default
_HP = jax.lax.Precision.HIGHEST


def _leaky_relu(x):
    return jnp.where(x > 0, x, NEG_SLOPE * x)


def _layer_norm(x, gamma, beta):
    mu = jnp.mean(x, axis=-1, keepdims=True)
    xc = x - mu
    var = jnp.mean(xc * xc, axis=-1, keepdims=True)
    return xc * jax.lax.rsqrt(var + LN_EPS) * gamma + beta


def att1_1_kernel(x_ref, g_ref, b_ref, waug_ref, baug_ref, o_ref):
    # x_ref:    (TB, N, D)   a tile of batch elements
    # g_ref:    (1, D)       LayerNorm gamma (shared by both LN applications)
    # b_ref:    (1, D)       LayerNorm beta
    # waug_ref: (D, D+1)     [Wv | a_ua + Wv @ a_val]
    # baug_ref: (1, D+1)     [bv | bv . a_val + b_a]
    # o_ref:    (TB, D)
    x = x_ref[...].astype(jnp.float32)
    gamma = g_ref[...]
    beta = b_ref[...]

    xn = _layer_norm(x, gamma, beta)                            # (TB, N, D)

    # ua[b, i] = xn[b, 0] * xn[b, i] for ALL N rows; row 0 is a dummy that is
    # masked out of the softmax below (keeps everything 8-sublane aligned, no
    # x[:, 1:] slice inside the kernel).
    ua = xn[:, 0:1, :] * xn                                     # (TB, N, D)

    tb, n, d = ua.shape
    ua2 = ua.reshape(tb * n, d)                                 # (TB*N, D)

    # Single fused MXU matmul: columns [0:D] = value projection, column D = the
    # folded concat-attention score  ua@a_ua + value@a_val + b_a.
    fused = jnp.dot(ua2, waug_ref[...],
                    preferred_element_type=jnp.float32,
                    precision=_HP)
    fused = fused + baug_ref[...]                               # (TB*N, D+1)

    value = fused[:, :d].reshape(tb, n, d)                      # (TB, N, D)
    s = fused[:, d:d + 1].reshape(tb, n, 1)                     # (TB, N, 1)

    e = _leaky_relu(s)

    # Mask the dummy uid row (f32 mask constant!), softmax over the item rows.
    row = jax.lax.broadcasted_iota(jnp.int32, e.shape, 1)
    e = jnp.where(row == 0, jnp.float32(-1e30), e)
    m = jnp.max(e, axis=1, keepdims=True)
    p = jnp.exp(e - m)
    denom = jnp.sum(p, axis=1, keepdims=True)
    alphas = p / denom                                          # (TB, N, 1), row0 = 0

    # Second LayerNorm (same weights) on value, attention-weighted sum over N.
    vn = _layer_norm(value, gamma, beta)                        # (TB, N, D)
    att = jnp.sum(alphas * vn, axis=1)                          # (TB, D)

    # LeakyReLU; dropout == identity in eval mode.
    o_ref[...] = _leaky_relu(att).astype(o_ref.dtype)


def att1_1_forward(embeddings, gamma, beta, w_v, b_v, a_ua, a_val, b_a,
                   *, tile_b=None):
    B, N, D = embeddings.shape
    if tile_b is None:
        tile_b = B          # test-scale: whole batch in one grid step
    assert B % tile_b == 0, (B, tile_b)

    # Wrapper-side algebraic fold (exact):
    #   score = ua @ (a_ua + Wv@a_val) + (bv.a_val + b_a)
    a_comb = a_ua + jnp.dot(w_v, a_val, precision=_HP)                  # (D, 1)
    c = (jnp.dot(b_v, a_val, precision=_HP) + b_a).reshape(1, 1)        # (1, 1)
    w_aug = jnp.concatenate([w_v, a_comb], axis=1).astype(jnp.float32)  # (D, D+1)
    b_aug = jnp.concatenate([b_v, c], axis=1).astype(jnp.float32)       # (1, D+1)

    out = pl.pallas_call(
        att1_1_kernel,
        out_shape=jax.ShapeDtypeStruct((B, D), embeddings.dtype),
        grid_spec=pltpu.PrefetchScalarGridSpec(
            num_scalar_prefetch=0,
            grid=(pl.cdiv(B, tile_b),),
            in_specs=[
                pl.BlockSpec((tile_b, N, D), lambda b: (b, 0, 0)),   # x
                pl.BlockSpec((1, D), lambda b: (0, 0)),              # gamma
                pl.BlockSpec((1, D), lambda b: (0, 0)),              # beta
                pl.BlockSpec((D, D + 1), lambda b: (0, 0)),          # W_aug
                pl.BlockSpec((1, D + 1), lambda b: (0, 0)),          # b_aug
            ],
            out_specs=pl.BlockSpec((tile_b, D), lambda b: (b, 0)),
        ),
        compiler_params=pltpu.CompilerParams(
            dimension_semantics=("parallel",)),
    )(embeddings, gamma, beta, w_aug, b_aug)
    return out


def att1_1_reference(embeddings, gamma, beta, w_v, b_v, a_ua, a_val, b_a):
    """Pure-JAX reference with the unfused (two-matmul) attention form."""
    def ln(x):
        mu = jnp.mean(x, axis=-1, keepdims=True)
        var = jnp.mean((x - mu) ** 2, axis=-1, keepdims=True)
        return (x - mu) / jnp.sqrt(var + LN_EPS) * gamma + beta

    x = ln(embeddings)                                              # (B, N, D)
    uid = x[:, 0:1, :]                                              # (B, 1, D)
    iatt = x[:, 1:, :]                                              # (B, M, D)
    ua = uid * iatt                                                 # (B, M, D)
    value = jnp.einsum("bmd,de->bme", ua, w_v, precision=_HP) + b_v
    s = (jnp.einsum("bmd,do->bmo", ua, a_ua, precision=_HP)
         + jnp.einsum("bmd,do->bmo", value, a_val, precision=_HP) + b_a)
    e = _leaky_relu(s)
    alphas = jax.nn.softmax(e, axis=-2)                             # over items
    vn = ln(value)
    att = jnp.sum(alphas * vn, axis=-2)                             # (B, D)
    return _leaky_relu(att)


if __name__ == "__main__":
    B, N, D = 2, 8, 32   # batch, nodes (uid + N-1 items), em_dim

    key = jax.random.PRNGKey(0)
    k = jax.random.split(key, 8)
    embeddings = jax.random.normal(k[0], (B, N, D), dtype=jnp.float32)
    # deterministic parameter init (shapes implied by the module)
    gamma = 1.0 + 0.1 * jax.random.normal(k[1], (1, D), dtype=jnp.float32)
    beta = 0.02 * jax.random.normal(k[2], (1, D), dtype=jnp.float32)
    w_v = jax.random.normal(k[3], (D, D), dtype=jnp.float32) * (1.0 / D ** 0.5)
    b_v = 0.02 * jax.random.normal(k[4], (1, D), dtype=jnp.float32)
    a_ua = jax.random.normal(k[5], (D, 1), dtype=jnp.float32) * (1.0 / D ** 0.5)
    a_val = jax.random.normal(k[6], (D, 1), dtype=jnp.float32) * (1.0 / D ** 0.5)
    b_a = 0.02 * jax.random.normal(k[7], (), dtype=jnp.float32)

    out = att1_1_forward(embeddings, gamma, beta, w_v, b_v, a_ua, a_val, b_a)
    out = jax.block_until_ready(out)

    ref = att1_1_reference(embeddings, gamma, beta, w_v, b_v, a_ua, a_val, b_a)
    assert out.shape == (B, D), out.shape
    max_err = float(jnp.max(jnp.abs(out - ref)))
    # Exact softmax division + HIGHEST-precision matmuls on both paths; 5e-4
    # leaves headroom for the score-fold reassociation and MXU f32 passes.
    assert jnp.allclose(out, ref, atol=5e-4, rtol=5e-4), max_err

    print("KERNEL_OK")
</pallas_src>

<mosaic_0001>
module attributes {stable_mosaic.version = 11 : i64} {
  func.func @att1_1_kernel(%arg0: i32, %arg1: memref<2x8x32xf32, #tpu.memory_space<vmem>>, %arg2: memref<1x32xf32, #tpu.memory_space<vmem>>, %arg3: memref<1x32xf32, #tpu.memory_space<vmem>>, %arg4: memref<32x33xf32, #tpu.memory_space<vmem>>, %arg5: memref<1x33xf32, #tpu.memory_space<vmem>>, %arg6: memref<2x32xf32, #tpu.memory_space<vmem>>) attributes {dimension_semantics = [#tpu.dimension_semantics<parallel>], iteration_bounds = array<i64: 1>, scalar_prefetch = 0 : i64, scratch_operands = 0 : i64, tpu.core_type = #tpu.core_type<tc>, window_params = [{transform_indices = @transform_0, window_bounds = array<i64: 2, 8, 32>}, {pipeline_mode = #tpu.pipeline_mode<synchronous>, transform_indices = @transform_1, window_bounds = array<i64: 1, 32>}, {pipeline_mode = #tpu.pipeline_mode<synchronous>, transform_indices = @transform_2, window_bounds = array<i64: 1, 32>}, {pipeline_mode = #tpu.pipeline_mode<synchronous>, transform_indices = @transform_3, window_bounds = array<i64: 32, 33>}, {pipeline_mode = #tpu.pipeline_mode<synchronous>, transform_indices = @transform_4, window_bounds = array<i64: 1, 33>}, {transform_indices = @transform_5, window_bounds = array<i64: 2, 32>}]} {
    %c0 = arith.constant 0 : index
    %c0_0 = arith.constant 0 : index
    %c0_1 = arith.constant 0 : index
    %0 = vector.load %arg1[%c0, %c0_0, %c0_1] : memref<2x8x32xf32, #tpu.memory_space<vmem>>, vector<2x8x32xf32>
    %c0_2 = arith.constant 0 : index
    %c0_3 = arith.constant 0 : index
    %1 = vector.load %arg2[%c0_2, %c0_3] : memref<1x32xf32, #tpu.memory_space<vmem>>, vector<1x32xf32>
    %c0_4 = arith.constant 0 : index
    %c0_5 = arith.constant 0 : index
    %2 = vector.load %arg3[%c0_4, %c0_5] : memref<1x32xf32, #tpu.memory_space<vmem>>, vector<1x32xf32>
    %cst = arith.constant dense<0.000000e+00> : vector<2x8xf32>
    %3 = vector.multi_reduction <add>, %0, %cst [2] : vector<2x8x32xf32> to vector<2x8xf32>
    %4 = vector.shape_cast %3 : vector<2x8xf32> to vector<2x8x1xf32>
    %cst_6 = arith.constant 3.200000e+01 : f32
    %5 = vector.broadcast %cst_6 : f32 to vector<2x8x1xf32>
    %6 = arith.divf %4, %5 : vector<2x8x1xf32>
    %7 = vector.broadcast %6 : vector<2x8x1xf32> to vector<2x8x32xf32>
    %8 = arith.subf %0, %7 : vector<2x8x32xf32>
    %9 = arith.mulf %8, %8 : vector<2x8x32xf32>
    %cst_7 = arith.constant dense<0.000000e+00> : vector<2x8xf32>
    %10 = vector.multi_reduction <add>, %9, %cst_7 [2] : vector<2x8x32xf32> to vector<2x8xf32>
    %11 = vector.shape_cast %10 : vector<2x8xf32> to vector<2x8x1xf32>
    %cst_8 = arith.constant 3.200000e+01 : f32
    %12 = vector.broadcast %cst_8 : f32 to vector<2x8x1xf32>
    %13 = arith.divf %11, %12 : vector<2x8x1xf32>
    %cst_9 = arith.constant 9.99999974E-6 : f32
    %14 = vector.broadcast %cst_9 : f32 to vector<2x8x1xf32>
    %15 = arith.addf %13, %14 : vector<2x8x1xf32>
    %16 = math.rsqrt %15 : vector<2x8x1xf32>
    %17 = vector.broadcast %16 : vector<2x8x1xf32> to vector<2x8x32xf32>
    %18 = arith.mulf %8, %17 : vector<2x8x32xf32>
    %19 = vector.shape_cast %1 : vector<1x32xf32> to vector<1x1x32xf32>
    %20 = vector.broadcast %19 : vector<1x1x32xf32> to vector<2x8x32xf32>
    %21 = arith.mulf %18, %20 : vector<2x8x32xf32>
    %22 = vector.shape_cast %2 : vector<1x32xf32> to vector<1x1x32xf32>
    %23 = vector.broadcast %22 : vector<1x1x32xf32> to vector<2x8x32xf32>
    %24 = arith.addf %21, %23 : vector<2x8x32xf32>
    %25 = vector.extract_strided_slice %24 {offsets = [0, 0, 0], sizes = [2, 1, 32], strides = [1, 1, 1]} : vector<2x8x32xf32> to vector<2x1x32xf32>
    %26 = vector.broadcast %25 : vector<2x1x32xf32> to vector<2x8x32xf32>
    %27 = arith.mulf %26, %24 : vector<2x8x32xf32>
    %28 = vector.shape_cast %27 : vector<2x8x32xf32> to vector<16x32xf32>
    %c0_10 = arith.constant 0 : index
    %c0_11 = arith.constant 0 : index
    %29 = vector.load %arg4[%c0_10, %c0_11] : memref<32x33xf32, #tpu.memory_space<vmem>>, vector<32x33xf32>
    %cst_12 = arith.constant dense<0.000000e+00> : vector<16x33xf32>
    %30 = tpu.matmul %28, %29, %cst_12 {dimension_numbers = #tpu.dot_dimension_numbers<[1], [0], [0], [1], [0, 0, 1, 1], [], []>, precision = #tpu.contract_precision<fp32>} : vector<16x32xf32>, vector<32x33xf32>, vector<16x33xf32> -> vector<16x33xf32>
    %c0_13 = arith.constant 0 : index
    %c0_14 = arith.constant 0 : index
    %31 = vector.load %arg5[%c0_13, %c0_14] : memref<1x33xf32, #tpu.memory_space<vmem>>, vector<1x33xf32>
    %32 = vector.broadcast %31 : vector<1x33xf32> to vector<16x33xf32>
    %33 = arith.addf %30, %32 : vector<16x33xf32>
    %34 = vector.extract_strided_slice %33 {offsets = [0, 0], sizes = [16, 32], strides = [1, 1]} : vector<16x33xf32> to vector<16x32xf32>
    %35 = vector.shape_cast %34 : vector<16x32xf32> to vector<2x8x32xf32>
    %36 = vector.extract_strided_slice %33 {offsets = [0, 32], sizes = [16, 1], strides = [1, 1]} : vector<16x33xf32> to vector<16x1xf32>
    %37 = vector.shape_cast %36 : vector<16x1xf32> to vector<2x8x1xf32>
    %cst_15 = arith.constant 0.000000e+00 : f32
    %38 = vector.broadcast %cst_15 : f32 to vector<2x8x1xf32>
    %39 = arith.cmpf ogt, %37, %38 : vector<2x8x1xf32>
    %cst_16 = arith.constant 0.00999999977 : f32
    %40 = vector.broadcast %cst_16 : f32 to vector<2x8x1xf32>
    %41 = arith.mulf %40, %37 : vector<2x8x1xf32>
    %42 = arith.select %39, %37, %41 : vector<2x8x1xi1>, vector<2x8x1xf32>
    %43 = tpu.iota {dimensions = array<i32: 1>} : vector<2x8x1xi32>
    %c0_i32 = arith.constant 0 : i32
    %44 = vector.broadcast %c0_i32 : i32 to vector<2x8x1xi32>
    %45 = arith.cmpi eq, %43, %44 : vector<2x8x1xi32>
    %cst_17 = arith.constant -1.000000e+30 : f32
    %46 = vector.broadcast %cst_17 : f32 to vector<2x8x1xf32>
    %47 = arith.select %45, %46, %42 : vector<2x8x1xi1>, vector<2x8x1xf32>
    %cst_18 = arith.constant dense<0xFF800000> : vector<2x1xf32>
    %48 = vector.multi_reduction <maximumf>, %47, %cst_18 [1] : vector<2x8x1xf32> to vector<2x1xf32>
    %49 = vector.shape_cast %48 : vector<2x1xf32> to vector<2x1x1xf32>
    %50 = vector.broadcast %49 : vector<2x1x1xf32> to vector<2x8x1xf32>
    %51 = arith.subf %47, %50 : vector<2x8x1xf32>
    %52 = math.exp %51 : vector<2x8x1xf32>
    %cst_19 = arith.constant dense<0.000000e+00> : vector<2x1xf32>
    %53 = vector.multi_reduction <add>, %52, %cst_19 [1] : vector<2x8x1xf32> to vector<2x1xf32>
    %54 = vector.shape_cast %53 : vector<2x1xf32> to vector<2x1x1xf32>
    %55 = vector.broadcast %54 : vector<2x1x1xf32> to vector<2x8x1xf32>
    %56 = arith.divf %52, %55 : vector<2x8x1xf32>
    %cst_20 = arith.constant dense<0.000000e+00> : vector<2x8xf32>
    %57 = vector.multi_reduction <add>, %35, %cst_20 [2] : vector<2x8x32xf32> to vector<2x8xf32>
    %58 = vector.shape_cast %57 : vector<2x8xf32> to vector<2x8x1xf32>
    %cst_21 = arith.constant 3.200000e+01 : f32
    %59 = vector.broadcast %cst_21 : f32 to vector<2x8x1xf32>
    %60 = arith.divf %58, %59 : vector<2x8x1xf32>
    %61 = vector.broadcast %60 : vector<2x8x1xf32> to vector<2x8x32xf32>
    %62 = arith.subf %35, %61 : vector<2x8x32xf32>
    %63 = arith.mulf %62, %62 : vector<2x8x32xf32>
    %cst_22 = arith.constant dense<0.000000e+00> : vector<2x8xf32>
    %64 = vector.multi_reduction <add>, %63, %cst_22 [2] : vector<2x8x32xf32> to vector<2x8xf32>
    %65 = vector.shape_cast %64 : vector<2x8xf32> to vector<2x8x1xf32>
    %cst_23 = arith.constant 3.200000e+01 : f32
    %66 = vector.broadcast %cst_23 : f32 to vector<2x8x1xf32>
    %67 = arith.divf %65, %66 : vector<2x8x1xf32>
    %cst_24 = arith.constant 9.99999974E-6 : f32
    %68 = vector.broadcast %cst_24 : f32 to vector<2x8x1xf32>
    %69 = arith.addf %67, %68 : vector<2x8x1xf32>
    %70 = math.rsqrt %69 : vector<2x8x1xf32>
    %71 = vector.broadcast %70 : vector<2x8x1xf32> to vector<2x8x32xf32>
    %72 = arith.mulf %62, %71 : vector<2x8x32xf32>
    %73 = vector.shape_cast %1 : vector<1x32xf32> to vector<1x1x32xf32>
    %74 = vector.broadcast %73 : vector<1x1x32xf32> to vector<2x8x32xf32>
    %75 = arith.mulf %72, %74 : vector<2x8x32xf32>
    %76 = vector.shape_cast %2 : vector<1x32xf32> to vector<1x1x32xf32>
    %77 = vector.broadcast %76 : vector<1x1x32xf32> to vector<2x8x32xf32>
    %78 = arith.addf %75, %77 : vector<2x8x32xf32>
    %79 = vector.broadcast %56 : vector<2x8x1xf32> to vector<2x8x32xf32>
    %80 = arith.mulf %79, %78 : vector<2x8x32xf32>
    %cst_25 = arith.constant dense<0.000000e+00> : vector<2x32xf32>
    %81 = vector.multi_reduction <add>, %80, %cst_25 [1] : vector<2x8x32xf32> to vector<2x32xf32>
    %cst_26 = arith.constant 0.000000e+00 : f32
    %82 = vector.broadcast %cst_26 : f32 to vector<2x32xf32>
    %83 = arith.cmpf ogt, %81, %82 : vector<2x32xf32>
    %cst_27 = arith.constant 0.00999999977 : f32
    %84 = vector.broadcast %cst_27 : f32 to vector<2x32xf32>
    %85 = arith.mulf %84, %81 : vector<2x32xf32>
    %86 = arith.select %83, %81, %85 : vector<2x32xi1>, vector<2x32xf32>
    %c0_28 = arith.constant 0 : index
    %c0_29 = arith.constant 0 : index
    %87 = vector.load %arg6[%c0_28, %c0_29] : memref<2x32xf32, #tpu.memory_space<vmem>>, vector<2x32xf32>
    tpu.vector_store %arg6[%c0_28, %c0_29], %86 {strides = array<i32>} : memref<2x32xf32, #tpu.memory_space<vmem>>, vector<2x32xf32>,
    return
  }
  func.func @transform_0(%arg0: i32) -> (i32, i32, i32) {
    %c0_i32 = arith.constant 0 : i32
    %c0_i32_0 = arith.constant 0 : i32
    %c0_i32_1 = arith.constant 0 : i32
    return %arg0, %c0_i32, %c0_i32_0 : i32, i32, i32
  }
  func.func @transform_1(%arg0: i32) -> (i32, i32) {
    %c0_i32 = arith.constant 0 : i32
    %c0_i32_0 = arith.constant 0 : i32
    %c0_i32_1 = arith.constant 0 : i32
    return %c0_i32, %c0_i32_0 : i32, i32
  }
  func.func @transform_2(%arg0: i32) -> (i32, i32) {
    %c0_i32 = arith.constant 0 : i32
    %c0_i32_0 = arith.constant 0 : i32
    %c0_i32_1 = arith.constant 0 : i32
    return %c0_i32, %c0_i32_0 : i32, i32
  }
  func.func @transform_3(%arg0: i32) -> (i32, i32) {
    %c0_i32 = arith.constant 0 : i32
    %c0_i32_0 = arith.constant 0 : i32
    %c0_i32_1 = arith.constant 0 : i32
    return %c0_i32, %c0_i32_0 : i32, i32
  }
  func.func @transform_4(%arg0: i32) -> (i32, i32) {
    %c0_i32 = arith.constant 0 : i32
    %c0_i32_0 = arith.constant 0 : i32
    %c0_i32_1 = arith.constant 0 : i32
    return %c0_i32, %c0_i32_0 : i32, i32
  }
  func.func @transform_5(%arg0: i32) -> (i32, i32) {
    %c0_i32 = arith.constant 0 : i32
    %c0_i32_0 = arith.constant 0 : i32
    return %arg0, %c0_i32 : i32, i32
  }
}

</mosaic_0001>

<llo_original>
// kernel: tpu_custom_call.1
$region0: #{tpu_custom_call.1}
  #allocation0 [shape = 'u32[]', space=smem, size = 0x4, offset = 0x4, fixed_abs, tag = 'smem constant byte address 0x4 - core index']
  #allocation1 [shape = 'u32[144,128]{1,0:T(1,128)}', space=vmem, size = 0x12000, scoped, tag = 'internal scratch']
  %s0 = inlined_call_operand.hbm [shape: f32[2,8,32], index: 0, kind: input, shape index: {}]
  %s1 = inlined_call_operand.vmem [shape: f32[1,32], index: 1, kind: input, shape index: {}]
  %s2 = inlined_call_operand.vmem [shape: f32[1,32], index: 2, kind: input, shape index: {}]
  %s3 = inlined_call_operand.hbm [shape: f32[32,33], index: 3, kind: input, shape index: {}]
  %s4 = inlined_call_operand.vmem [shape: f32[1,33], index: 4, kind: input, shape index: {}]
  %s5 = inlined_call_operand.hbm [shape: f32[2,32], index: 5, kind: output, shape index: {}]
  %s6 = sld [smem:[#allocation0]]
  $region38: #{tpu_custom_call.1} parent=0
    _
  %s8 = ssub.s32 1, %s6
  %s9 = scalar_select 0, %s8, %s6
  $region1: #{tpu_custom_call.1} parent=0
    #allocation2 [shape = 'u8[8192]{0}', space=vmem, size = 0x2000, scoped, tag = 'input window, operand 0, single buffered']
    #allocation3 [shape = 's32[1]{0}', space=sflag, size = 0x4, scoped, tag = 'scoped memory for tpu_custom_call.1']
    #allocation4 [shape = 's32[1]{0}', space=sflag, size = 0x4, scoped, tag = 'scoped memory for tpu_custom_call.1']
    #allocation5 [shape = 'u8[16384]{0}', space=vmem, size = 0x4000, scoped, tag = 'input window, operand 3, single buffered']
    #allocation6 [shape = 's32[1]{0}', space=sflag, size = 0x4, scoped, tag = 'scoped memory for tpu_custom_call.1']
    #allocation7 [shape = 'u8[1024]{0}', space=vmem, size = 0x400, scoped, tag = 'output window, operand 0, single buffered']
    %10 = vsyncpa [#allocation3], 0
    %11 = vsyncpa [#allocation6], 0
    %12 = vsyncpa [#allocation4], 0
    // Predicated region
    $region2: #{tpu_custom_call.1} parent=1 // pred_check
      _
    $region3: #{tpu_custom_call.1} parent=1 // pred_check_branch
      %14 = sbr.rel (0) target = $region5
    $region4: #{tpu_custom_call.1} parent=1 // pred_region
      %s16 = ssub.s32 256, 256
      %17 = vsyncadd [#allocation3], %s16
      %s18 = sshll.u32 [#allocation2], 4
      %s19 = int_to_ptr.vmem [resolvable:$true] %s18
      %24 = dma.hbm_to_vmem [thread:$0]  %s0, 256, %s19, [#allocation3], 128, 128, 8
    $region5: #{tpu_custom_call.1} parent=1 // pred_fallthru
      _
    // Predicated region
    $region6: #{tpu_custom_call.1} parent=1 // pred_check
      _
    $region7: #{tpu_custom_call.1} parent=1 // pred_check_branch
      %26 = sbr.rel (0) target = $region9
    $region8: #{tpu_custom_call.1} parent=1 // pred_region
      _
    $region9: #{tpu_custom_call.1} parent=1 // pred_fallthru
      _
    // Predicated region
    $region10: #{tpu_custom_call.1} parent=1 // pred_check
      _
    $region11: #{tpu_custom_call.1} parent=1 // pred_check_branch
      %28 = sbr.rel (0) target = $region13
    $region12: #{tpu_custom_call.1} parent=1 // pred_region
      _
    $region13: #{tpu_custom_call.1} parent=1 // pred_fallthru
      _
    // Predicated region
    $region14: #{tpu_custom_call.1} parent=1 // pred_check
      _
    $region15: #{tpu_custom_call.1} parent=1 // pred_check_branch
      %30 = sbr.rel (0) target = $region17
    $region16: #{tpu_custom_call.1} parent=1 // pred_region
      %s32 = ssub.s32 512, 512
      %33 = vsyncadd [#allocation6], %s32
      %s34 = sshll.u32 [#allocation5], 4
      %s35 = int_to_ptr.vmem [resolvable:$true] %s34
      %40 = dma.hbm_to_vmem [thread:$0]  %s3, 512, %s35, [#allocation6], 128, 128, 8
    $region17: #{tpu_custom_call.1} parent=1 // pred_fallthru
      _
    // Predicated region
    $region18: #{tpu_custom_call.1} parent=1 // pred_check
      _
    $region19: #{tpu_custom_call.1} parent=1 // pred_check_branch
      %42 = sbr.rel (0) target = $region21
    $region20: #{tpu_custom_call.1} parent=1 // pred_region
      _
    $region21: #{tpu_custom_call.1} parent=1 // pred_fallthru
      _
    // Predicated region
    $region22: #{tpu_custom_call.1} parent=1 // pred_check
      _
    $region23: #{tpu_custom_call.1} parent=1 // pred_check_branch
      %44 = sbr.rel (0) target = $region25
    $region24: #{tpu_custom_call.1} parent=1 // pred_region
      %45 = dma.done [#allocation3], 256
    $region25: #{tpu_custom_call.1} parent=1 // pred_fallthru
      _
    // Predicated region
    $region26: #{tpu_custom_call.1} parent=1 // pred_check
      _
    $region27: #{tpu_custom_call.1} parent=1 // pred_check_branch
      %47 = sbr.rel (0) target = $region29
    $region28: #{tpu_custom_call.1} parent=1 // pred_region
      %48 = dma.done [#allocation6], 512
    $region29: #{tpu_custom_call.1} parent=1 // pred_fallthru
      _
    %v49 = vld [vmem:[#allocation2] sm:$0xff]
    %v50 = vld [vmem:[#allocation2 + $0x8] sm:$0xff]
    %v51 = vld [vmem:[%s1] sm:$0x1]
    %v52 = vld [vmem:[%s2] sm:$0x1]
    %vm53 = vcmask 261120
    %v54 = vsel %vm53, %v49, 0.0
    %55 = vadd.xlane.f32.xlu0 %v54
    %v56 = vpop.xlane.xlu0 %55
    %v57 = vsel %vm53, %v50, 0.0
    %58 = vadd.xlane.f32.xlu0 %v57
    %v59 = vpop.xlane.xlu0 %58
    %v60 = vrcp.pop 32.0
    %v61 = vmul.f32 %v56, %v60
    %v62 = vmul.f32 %v59, %v60
    %v63 = vsub.f32 %v49, %v61
    %v64 = vsub.f32 %v50, %v62
    %v65 = vmul.f32 %v63, %v63
    %v66 = vmul.f32 %v64, %v64
    %v67 = vsel %vm53, %v65, 0.0
    %68 = vadd.xlane.f32.xlu0 %v67
    %v69 = vpop.xlane.xlu0 %68
    %v70 = vsel %vm53, %v66, 0.0
    %71 = vadd.xlane.f32.xlu0 %v70
    %v72 = vpop.xlane.xlu0 %71
    %v73 = vmul.f32 %v69, %v60
    %v74 = vmul.f32 %v72, %v60
    %v75 = vadd.f32 %v73, 1e-05
    %v76 = vadd.f32 %v74, 1e-05
    %v77 = vrsqrt.pop %v75
    %v78 = vrsqrt.pop %v76
    %v79 = vmul.f32 %v63, %v77
    %v80 = vmul.f32 %v64, %v78
    %v82 = vlaneseq
    %v83 = vshrl.u32 %v82, 7
    %v84 = vsub.s32 0, %v83
    %v85 = vrot.slane %v51, %v84
    %v87 = vmul.f32 %v79, %v85
    %v88 = vmul.f32 %v80, %v85
    %v90 = vlaneseq
    %v91 = vshrl.u32 %v90, 7
    %v92 = vsub.s32 0, %v91
    %v93 = vrot.slane %v52, %v92
    %v95 = vadd.f32 %v87, %v93
    %v96 = vadd.f32 %v88, %v93
    %v97 = vlaneseq
    %v98 = vshrl.u32 %v97, 7
    %v99 = vsub.s32 0, %v98
    %v100 = vrot.slane %v95, %v99
    %v101 = vlaneseq
    %v102 = vshrl.u32 %v101, 7
    %v103 = vsub.s32 0, %v102
    %v104 = vrot.slane %v96, %v103
    %v105 = vmul.f32 %v100, %v95
    %v106 = vmul.f32 %v104, %v96
    %v107 = vld [vmem:[#allocation5] sm:$0xff]
    %v108 = vld [vmem:[#allocation5 + $0x8] sm:$0xff]
    %v109 = vld [vmem:[#allocation5 + $0x10] sm:$0xff]
    %v110 = vld [vmem:[#allocation5 + $0x18] sm:$0xff]
    %v111 = vld [vmem:[%s4] sm:$0x1]
    %v113 = vlaneseq
    %v114 = vshrl.u32 %v113, 7
    %v115 = vsub.s32 0, %v114
    %v116 = vrot.slane %v111, %v115
    %v119 = vsel %vm53, %v105, 0
    %v122 = vsel %vm53, %v106, 0
    %124 = vmatprep.subr.mxu0 0.0
    %125 = vmatpush1.msra.mxu0 0.0
    %126 = vmatprep.subr.mxu0 0.0
    %127 = vmatpush1.msra.mxu0 0.0
    %128 = vmatprep.subr.mxu0 0.0
    %129 = vmatpush1.msra.mxu0 0.0
    %130 = vmatprep.subr.mxu0 0.0
    %131 = vmatpush1.msra.mxu0 0.0
    %132 = vmatprep.subr.mxu0 0.0
    %133 = vmatpush1.msra.mxu0 0.0
    %134 = vmatprep.subr.mxu0 0.0
    %135 = vmatpush1.msra.mxu0 0.0
    %136 = vmatprep.subr.mxu0 0.0
    %137 = vmatpush1.msra.mxu0 0.0
    %138 = vmatprep.subr.mxu0 0.0
    %139 = vmatpush1.msra.mxu0 0.0
    %140 = vmatprep.subr.mxu0 0.0
    %141 = vmatpush1.msra.mxu0 0.0
    %142 = vmatprep.subr.mxu0 0.0
    %143 = vmatpush1.msra.mxu0 0.0
    %144 = vmatprep.subr.mxu0 0.0
    %145 = vmatpush1.msra.mxu0 0.0
    %146 = vmatprep.subr.mxu0 0.0
    %147 = vmatpush1.msra.mxu0 0.0
    %148 = vmatprep.subr.mxu0 0.0
    %v149 = vand.u32 %v110, 4294901760
    %150 = vmatpush1.msra.mxu0 %v149
    %151 = vmatprep.subr.mxu0 0.0
    %v152 = vand.u32 %v109, 4294901760
    %153 = vmatpush1.msra.mxu0 %v152
    %154 = vmatprep.subr.mxu0 0.0
    %v155 = vand.u32 %v108, 4294901760
    %156 = vmatpush1.msra.mxu0 %v155
    %157 = vmatprep.subr.mxu0 0.0
    %v158 = vand.u32 %v107, 4294901760
    %159 = vmatpush1.msra.mxu0 %v158
    %160 = vmatprep.subr.mxu0 0.0
    %161 = vmatpush2.msra.mxu0 0.0
    %162 = vmatprep.subr.mxu0 0.0
    %163 = vmatpush2.msra.mxu0 0.0
    %164 = vmatprep.subr.mxu0 0.0
    %165 = vmatpush2.msra.mxu0 0.0
    %166 = vmatprep.subr.mxu0 0.0
    %167 = vmatpush2.msra.mxu0 0.0
    %168 = vmatprep.subr.mxu0 0.0
    %169 = vmatpush2.msra.mxu0 0.0
    %170 = vmatprep.subr.mxu0 0.0
    %171 = vmatpush2.msra.mxu0 0.0
    %172 = vmatprep.subr.mxu0 0.0
    %173 = vmatpush2.msra.mxu0 0.0
    %174 = vmatprep.subr.mxu0 0.0
    %175 = vmatpush2.msra.mxu0 0.0
    %176 = vmatprep.subr.mxu0 0.0
    %177 = vmatpush2.msra.mxu0 0.0
    %178 = vmatprep.subr.mxu0 0.0
    %179 = vmatpush2.msra.mxu0 0.0
    %180 = vmatprep.subr.mxu0 0.0
    %181 = vmatpush2.msra.mxu0 0.0
    %182 = vmatprep.subr.mxu0 0.0
    %183 = vmatpush2.msra.mxu0 0.0
    %184 = vmatprep.subr.mxu0 0.0
    %185 = vmatpush2.msra.mxu0 0.0
    %186 = vmatprep.subr.mxu0 0.0
    %187 = vmatpush2.msra.mxu0 0.0
    %188 = vmatprep.subr.mxu0 0.0
    %189 = vmatpush2.msra.mxu0 0.0
    %190 = vmatprep.subr.mxu0 0.0
    %191 = vmatpush2.msra.mxu0 0.0
    %192 = vmatprep.mubr.f32.mxu0 0.0
    %v193 = vand.u32 %v119, 4294901760
    %v194 = vsub.f32 %v119, %v193
    %v195 = vand.u32 %v194, 4294901760
    %v196 = vsub.f32 %v194, %v195
    %v197 = vand.u32 %v196, 4294901760
    %198 = vmatmul.mubr.f32.gmra.mxu0 %v197
    %v199 = vpop.f32.mrf.mxu0
    %v200 = vadd.f32 %v116, %v199
    %v201 = vpop.f32.mrf.mxu0
    %202 = vmatprep.mubr.f32.mxu0 0.0
    %v203 = vand.u32 %v122, 4294901760
    %v204 = vsub.f32 %v122, %v203
    %v205 = vand.u32 %v204, 4294901760
    %v206 = vsub.f32 %v204, %v205
    %v207 = vand.u32 %v206, 4294901760
    %208 = vmatmul.mubr.f32.gmra.mxu0 %v207
    %v209 = vpop.f32.mrf.mxu0
    %v210 = vadd.f32 %v116, %v209
    %v211 = vpop.f32.mrf.mxu0
    %212 = vdwg.mxu0
    %213 = vmatprep.subr.mxu0 0.0
    %214 = vmatpush1.msra.mxu0 0.0
    %215 = vmatprep.subr.mxu0 0.0
    %216 = vmatpush1.msra.mxu0 0.0
    %217 = vmatprep.subr.mxu0 0.0
    %218 = vmatpush1.msra.mxu0 0.0
    %219 = vmatprep.subr.mxu0 0.0
    %220 = vmatpush1.msra.mxu0 0.0
    %221 = vmatprep.subr.mxu0 0.0
    %222 = vmatpush1.msra.mxu0 0.0
    %223 = vmatprep.subr.mxu0 0.0
    %224 = vmatpush1.msra.mxu0 0.0
    %225 = vmatprep.subr.mxu0 0.0
    %226 = vmatpush1.msra.mxu0 0.0
    %227 = vmatprep.subr.mxu0 0.0
    %228 = vmatpush1.msra.mxu0 0.0
    %229 = vmatprep.subr.mxu0 0.0
    %230 = vmatpush1.msra.mxu0 0.0
    %231 = vmatprep.subr.mxu0 0.0
    %232 = vmatpush1.msra.mxu0 0.0
    %233 = vmatprep.subr.mxu0 0.0
    %234 = vmatpush1.msra.mxu0 0.0
    %235 = vmatprep.subr.mxu0 0.0
    %236 = vmatpush1.msra.mxu0 0.0
    %237 = vmatprep.subr.mxu0 0.0
    %v238 = vand.u32 %v110, 4294901760
    %v239 = vsub.f32 %v110, %v238
    %v240 = vand.u32 %v239, 4294901760
    %v241 = vsub.f32 %v239, %v240
    %v242 = vand.u32 %v241, 4294901760
    %243 = vmatpush1.msra.mxu0 %v242
    %244 = vmatprep.subr.mxu0 0.0
    %v245 = vand.u32 %v109, 4294901760
    %v246 = vsub.f32 %v109, %v245
    %v247 = vand.u32 %v246, 4294901760
    %v248 = vsub.f32 %v246, %v247
    %v249 = vand.u32 %v248, 4294901760
    %250 = vmatpush1.msra.mxu0 %v249
    %251 = vmatprep.subr.mxu0 0.0
    %v252 = vand.u32 %v108, 4294901760
    %v253 = vsub.f32 %v108, %v252
    %v254 = vand.u32 %v253, 4294901760
    %v255 = vsub.f32 %v253, %v254
    %v256 = vand.u32 %v255, 4294901760
    %257 = vmatpush1.msra.mxu0 %v256
    %258 = vmatprep.subr.mxu0 0.0
    %v259 = vand.u32 %v107, 4294901760
    %v260 = vsub.f32 %v107, %v259
    %v261 = vand.u32 %v260, 4294901760
    %v262 = vsub.f32 %v260, %v261
    %v263 = vand.u32 %v262, 4294901760
    %264 = vmatpush1.msra.mxu0 %v263
    %265 = vmatprep.subr.mxu0 0.0
    %266 = vmatpush2.msra.mxu0 0.0
    %267 = vmatprep.subr.mxu0 0.0
    %268 = vmatpush2.msra.mxu0 0.0
    %269 = vmatprep.subr.mxu0 0.0
    %270 = vmatpush2.msra.mxu0 0.0
    %271 = vmatprep.subr.mxu0 0.0
    %272 = vmatpush2.msra.mxu0 0.0
    %273 = vmatprep.subr.mxu0 0.0
    %274 = vmatpush2.msra.mxu0 0.0
    %275 = vmatprep.subr.mxu0 0.0
    %276 = vmatpush2.msra.mxu0 0.0
    %277 = vmatprep.subr.mxu0 0.0
    %278 = vmatpush2.msra.mxu0 0.0
    %279 = vmatprep.subr.mxu0 0.0
    %280 = vmatpush2.msra.mxu0 0.0
    %281 = vmatprep.subr.mxu0 0.0
    %282 = vmatpush2.msra.mxu0 0.0
    %283 = vmatprep.subr.mxu0 0.0
    %284 = vmatpush2.msra.mxu0 0.0
    %285 = vmatprep.subr.mxu0 0.0
    %286 = vmatpush2.msra.mxu0 0.0
    %287 = vmatprep.subr.mxu0 0.0
    %288 = vmatpush2.msra.mxu0 0.0
    %289 = vmatprep.subr.mxu0 0.0
    %290 = vmatpush2.msra.mxu0 0.0
    %291 = vmatprep.subr.mxu0 0.0
    %292 = vmatpush2.msra.mxu0 0.0
    %293 = vmatprep.subr.mxu0 0.0
    %294 = vmatpush2.msra.mxu0 0.0
    %295 = vmatprep.subr.mxu0 0.0
    %296 = vmatpush2.msra.mxu0 0.0
    %297 = vmatprep.mubr.f32.mxu0 0.0
    %v298 = vand.u32 %v119, 4294901760
    %299 = vmatmul.mubr.f32.gmra.mxu0 %v298
    %v300 = vpop.f32.mrf.mxu0
    %v301 = vadd.f32 %v200, %v300
    %v302 = vpop.f32.mrf.mxu0
    %303 = vmatprep.mubr.f32.mxu0 0.0
    %v304 = vand.u32 %v122, 4294901760
    %305 = vmatmul.mubr.f32.gmra.mxu0 %v304
    %v306 = vpop.f32.mrf.mxu0
    %v307 = vadd.f32 %v210, %v306
    %v308 = vpop.f32.mrf.mxu0
    %309 = vdwg.mxu0
    %310 = vmatprep.subr.mxu0 0.0
    %311 = vmatpush1.msra.mxu0 0.0
    %312 = vmatprep.subr.mxu0 0.0
    %313 = vmatpush1.msra.mxu0 0.0
    %314 = vmatprep.subr.mxu0 0.0
    %315 = vmatpush1.msra.mxu0 0.0
    %316 = vmatprep.subr.mxu0 0.0
    %317 = vmatpush1.msra.mxu0 0.0
    %318 = vmatprep.subr.mxu0 0.0
    %319 = vmatpush1.msra.mxu0 0.0
    %320 = vmatprep.subr.mxu0 0.0
    %321 = vmatpush1.msra.mxu0 0.0
    %322 = vmatprep.subr.mxu0 0.0
    %323 = vmatpush1.msra.mxu0 0.0
    %324 = vmatprep.subr.mxu0 0.0
    %325 = vmatpush1.msra.mxu0 0.0
    %326 = vmatprep.subr.mxu0 0.0
    %327 = vmatpush1.msra.mxu0 0.0
    %328 = vmatprep.subr.mxu0 0.0
    %329 = vmatpush1.msra.mxu0 0.0
    %330 = vmatprep.subr.mxu0 0.0
    %331 = vmatpush1.msra.mxu0 0.0
    %332 = vmatprep.subr.mxu0 0.0
    %333 = vmatpush1.msra.mxu0 0.0
    %334 = vmatprep.subr.mxu0 0.0
    %v335 = vand.u32 %v110, 4294901760
    %v336 = vsub.f32 %v110, %v335
    %337 = vmatpush1.msra.mxu0 %v336
    %338 = vmatprep.subr.mxu0 0.0
    %v339 = vand.u32 %v109, 4294901760
    %v340 = vsub.f32 %v109, %v339
    %341 = vmatpush1.msra.mxu0 %v340
    %342 = vmatprep.subr.mxu0 0.0
    %v343 = vand.u32 %v108, 4294901760
    %v344 = vsub.f32 %v108, %v343
    %345 = vmatpush1.msra.mxu0 %v344
    %346 = vmatprep.subr.mxu0 0.0
    %v347 = vand.u32 %v107, 4294901760
    %v348 = vsub.f32 %v107, %v347
    %349 = vmatpush1.msra.mxu0 %v348
    %350 = vmatprep.subr.mxu0 0.0
    %351 = vmatpush2.msra.mxu0 0.0
    %352 = vmatprep.subr.mxu0 0.0
    %353 = vmatpush2.msra.mxu0 0.0
    %354 = vmatprep.subr.mxu0 0.0
    %355 = vmatpush2.msra.mxu0 0.0
    %356 = vmatprep.subr.mxu0 0.0
    %357 = vmatpush2.msra.mxu0 0.0
    %358 = vmatprep.subr.mxu0 0.0
    %359 = vmatpush2.msra.mxu0 0.0
    %360 = vmatprep.subr.mxu0 0.0
    %361 = vmatpush2.msra.mxu0 0.0
    %362 = vmatprep.subr.mxu0 0.0
    %363 = vmatpush2.msra.mxu0 0.0
    %364 = vmatprep.subr.mxu0 0.0
    %365 = vmatpush2.msra.mxu0 0.0
    %366 = vmatprep.subr.mxu0 0.0
    %367 = vmatpush2.msra.mxu0 0.0
    %368 = vmatprep.subr.mxu0 0.0
    %369 = vmatpush2.msra.mxu0 0.0
    %370 = vmatprep.subr.mxu0 0.0
    %371 = vmatpush2.msra.mxu0 0.0
    %372 = vmatprep.subr.mxu0 0.0
    %373 = vmatpush2.msra.mxu0 0.0
    %374 = vmatprep.subr.mxu0 0.0
    %375 = vmatpush2.msra.mxu0 0.0
    %376 = vmatprep.subr.mxu0 0.0
    %377 = vmatpush2.msra.mxu0 0.0
    %378 = vmatprep.subr.mxu0 0.0
    %379 = vmatpush2.msra.mxu0 0.0
    %380 = vmatprep.subr.mxu0 0.0
    %381 = vmatpush2.msra.mxu0 0.0
    %382 = vmatprep.mubr.f32.mxu0 0.0
    %v383 = vand.u32 %v119, 4294901760
    %v384 = vsub.f32 %v119, %v383
    %385 = vmatmul.mubr.f32.gmra.mxu0 %v384
    %v386 = vpop.f32.mrf.mxu0
    %v387 = vadd.f32 %v301, %v386
    %v388 = vpop.f32.mrf.mxu0
    %389 = vmatprep.mubr.f32.mxu0 0.0
    %v390 = vand.u32 %v122, 4294901760
    %v391 = vsub.f32 %v122, %v390
    %392 = vmatmul.mubr.f32.gmra.mxu0 %v391
    %v393 = vpop.f32.mrf.mxu0
    %v394 = vadd.f32 %v307, %v393
    %v395 = vpop.f32.mrf.mxu0
    %396 = vdwg.mxu0
    %397 = vmatprep.subr.mxu0 0.0
    %398 = vmatpush1.msra.mxu0 0.0
    %399 = vmatprep.subr.mxu0 0.0
    %400 = vmatpush1.msra.mxu0 0.0
    %401 = vmatprep.subr.mxu0 0.0
    %402 = vmatpush1.msra.mxu0 0.0
    %403 = vmatprep.subr.mxu0 0.0
    %404 = vmatpush1.msra.mxu0 0.0
    %405 = vmatprep.subr.mxu0 0.0
    %406 = vmatpush1.msra.mxu0 0.0
    %407 = vmatprep.subr.mxu0 0.0
    %408 = vmatpush1.msra.mxu0 0.0
    %409 = vmatprep.subr.mxu0 0.0
    %410 = vmatpush1.msra.mxu0 0.0
    %411 = vmatprep.subr.mxu0 0.0
    %412 = vmatpush1.msra.mxu0 0.0
    %413 = vmatprep.subr.mxu0 0.0
    %414 = vmatpush1.msra.mxu0 0.0
    %415 = vmatprep.subr.mxu0 0.0
    %416 = vmatpush1.msra.mxu0 0.0
    %417 = vmatprep.subr.mxu0 0.0
    %418 = vmatpush1.msra.mxu0 0.0
    %419 = vmatprep.subr.mxu0 0.0
    %420 = vmatpush1.msra.mxu0 0.0
    %421 = vmatprep.subr.mxu0 0.0
    %v422 = vand.u32 %v110, 4294901760
    %423 = vmatpush1.msra.mxu0 %v422
    %424 = vmatprep.subr.mxu0 0.0
    %v425 = vand.u32 %v109, 4294901760
    %426 = vmatpush1.msra.mxu0 %v425
    %427 = vmatprep.subr.mxu0 0.0
    %v428 = vand.u32 %v108, 4294901760
    %429 = vmatpush1.msra.mxu0 %v428
    %430 = vmatprep.subr.mxu0 0.0
    %v431 = vand.u32 %v107, 4294901760
    %432 = vmatpush1.msra.mxu0 %v431
    %433 = vmatprep.subr.mxu0 0.0
    %434 = vmatpush2.msra.mxu0 0.0
    %435 = vmatprep.subr.mxu0 0.0
    %436 = vmatpush2.msra.mxu0 0.0
    %437 = vmatprep.subr.mxu0 0.0
    %438 = vmatpush2.msra.mxu0 0.0
    %439 = vmatprep.subr.mxu0 0.0
    %440 = vmatpush2.msra.mxu0 0.0
    %441 = vmatprep.subr.mxu0 0.0
    %442 = vmatpush2.msra.mxu0 0.0
    %443 = vmatprep.subr.mxu0 0.0
    %444 = vmatpush2.msra.mxu0 0.0
    %445 = vmatprep.subr.mxu0 0.0
    %446 = vmatpush2.msra.mxu0 0.0
    %447 = vmatprep.subr.mxu0 0.0
    %448 = vmatpush2.msra.mxu0 0.0
    %449 = vmatprep.subr.mxu0 0.0
    %450 = vmatpush2.msra.mxu0 0.0
    %451 = vmatprep.subr.mxu0 0.0
    %452 = vmatpush2.msra.mxu0 0.0
    %453 = vmatprep.subr.mxu0 0.0
    %454 = vmatpush2.msra.mxu0 0.0
    %455 = vmatprep.subr.mxu0 0.0
    %456 = vmatpush2.msra.mxu0 0.0
    %457 = vmatprep.subr.mxu0 0.0
    %458 = vmatpush2.msra.mxu0 0.0
    %459 = vmatprep.subr.mxu0 0.0
    %460 = vmatpush2.msra.mxu0 0.0
    %461 = vmatprep.subr.mxu0 0.0
    %462 = vmatpush2.msra.mxu0 0.0
    %463 = vmatprep.subr.mxu0 0.0
    %464 = vmatpush2.msra.mxu0 0.0
    %465 = vmatprep.mubr.f32.mxu0 0.0
    %v466 = vand.u32 %v119, 4294901760
    %v467 = vsub.f32 %v119, %v466
    %v468 = vand.u32 %v467, 4294901760
    %469 = vmatmul.mubr.f32.gmra.mxu0 %v468
    %v470 = vpop.f32.mrf.mxu0
    %v471 = vadd.f32 %v387, %v470
    %v472 = vpop.f32.mrf.mxu0
    %473 = vmatprep.mubr.f32.mxu0 0.0
    %v474 = vand.u32 %v122, 4294901760
    %v475 = vsub.f32 %v122, %v474
    %v476 = vand.u32 %v475, 4294901760
    %477 = vmatmul.mubr.f32.gmra.mxu0 %v476
    %v478 = vpop.f32.mrf.mxu0
    %v479 = vadd.f32 %v394, %v478
    %v480 = vpop.f32.mrf.mxu0
    %481 = vdwg.mxu0
    %482 = vmatprep.subr.mxu0 0.0
    %483 = vmatpush1.msra.mxu0 0.0
    %484 = vmatprep.subr.mxu0 0.0
    %485 = vmatpush1.msra.mxu0 0.0
    %486 = vmatprep.subr.mxu0 0.0
    %487 = vmatpush1.msra.mxu0 0.0
    %488 = vmatprep.subr.mxu0 0.0
    %489 = vmatpush1.msra.mxu0 0.0
    %490 = vmatprep.subr.mxu0 0.0
    %491 = vmatpush1.msra.mxu0 0.0
    %492 = vmatprep.subr.mxu0 0.0
    %493 = vmatpush1.msra.mxu0 0.0
    %494 = vmatprep.subr.mxu0 0.0
    %495 = vmatpush1.msra.mxu0 0.0
    %496 = vmatprep.subr.mxu0 0.0
    %497 = vmatpush1.msra.mxu0 0.0
    %498 = vmatprep.subr.mxu0 0.0
    %499 = vmatpush1.msra.mxu0 0.0
    %500 = vmatprep.subr.mxu0 0.0
    %501 = vmatpush1.msra.mxu0 0.0
    %502 = vmatprep.subr.mxu0 0.0
    %503 = vmatpush1.msra.mxu0 0.0
    %504 = vmatprep.subr.mxu0 0.0
    %505 = vmatpush1.msra.mxu0 0.0
    %506 = vmatprep.subr.mxu0 0.0
    %v507 = vand.u32 %v110, 4294901760
    %v508 = vsub.f32 %v110, %v507
    %v509 = vand.u32 %v508, 4294901760
    %510 = vmatpush1.msra.mxu0 %v509
    %511 = vmatprep.subr.mxu0 0.0
    %v512 = vand.u32 %v109, 4294901760
    %v513 = vsub.f32 %v109, %v512
    %v514 = vand.u32 %v513, 4294901760
    %515 = vmatpush1.msra.mxu0 %v514
    %516 = vmatprep.subr.mxu0 0.0
    %v517 = vand.u32 %v108, 4294901760
    %v518 = vsub.f32 %v108, %v517
    %v519 = vand.u32 %v518, 4294901760
    %520 = vmatpush1.msra.mxu0 %v519
    %521 = vmatprep.subr.mxu0 0.0
    %v522 = vand.u32 %v107, 4294901760
    %v523 = vsub.f32 %v107, %v522
    %v524 = vand.u32 %v523, 4294901760
    %525 = vmatpush1.msra.mxu0 %v524
    %526 = vmatprep.subr.mxu0 0.0
    %527 = vmatpush2.msra.mxu0 0.0
    %528 = vmatprep.subr.mxu0 0.0
    %529 = vmatpush2.msra.mxu0 0.0
    %530 = vmatprep.subr.mxu0 0.0
    %531 = vmatpush2.msra.mxu0 0.0
    %532 = vmatprep.subr.mxu0 0.0
    %533 = vmatpush2.msra.mxu0 0.0
    %534 = vmatprep.subr.mxu0 0.0
    %535 = vmatpush2.msra.mxu0 0.0
    %536 = vmatprep.subr.mxu0 0.0
    %537 = vmatpush2.msra.mxu0 0.0
    %538 = vmatprep.subr.mxu0 0.0
    %539 = vmatpush2.msra.mxu0 0.0
    %540 = vmatprep.subr.mxu0 0.0
    %541 = vmatpush2.msra.mxu0 0.0
    %542 = vmatprep.subr.mxu0 0.0
    %543 = vmatpush2.msra.mxu0 0.0
    %544 = vmatprep.subr.mxu0 0.0
    %545 = vmatpush2.msra.mxu0 0.0
    %546 = vmatprep.subr.mxu0 0.0
    %547 = vmatpush2.msra.mxu0 0.0
    %548 = vmatprep.subr.mxu0 0.0
    %549 = vmatpush2.msra.mxu0 0.0
    %550 = vmatprep.subr.mxu0 0.0
    %551 = vmatpush2.msra.mxu0 0.0
    %552 = vmatprep.subr.mxu0 0.0
    %553 = vmatpush2.msra.mxu0 0.0
    %554 = vmatprep.subr.mxu0 0.0
    %555 = vmatpush2.msra.mxu0 0.0
    %556 = vmatprep.subr.mxu0 0.0
    %557 = vmatpush2.msra.mxu0 0.0
    %558 = vmatprep.mubr.f32.mxu0 0.0
    %v559 = vand.u32 %v119, 4294901760
    %560 = vmatmul.mubr.f32.gmra.mxu0 %v559
    %v561 = vpop.f32.mrf.mxu0
    %v562 = vadd.f32 %v471, %v561
    %v563 = vpop.f32.mrf.mxu0
    %564 = vmatprep.mubr.f32.mxu0 0.0
    %v565 = vand.u32 %v122, 4294901760
    %566 = vmatmul.mubr.f32.gmra.mxu0 %v565
    %v567 = vpop.f32.mrf.mxu0
    %v568 = vadd.f32 %v479, %v567
    %v569 = vpop.f32.mrf.mxu0
    %570 = vdwg.mxu0
    %571 = vmatprep.subr.mxu0 0.0
    %572 = vmatpush1.msra.mxu0 0.0
    %573 = vmatprep.subr.mxu0 0.0
    %574 = vmatpush1.msra.mxu0 0.0
    %575 = vmatprep.subr.mxu0 0.0
    %576 = vmatpush1.msra.mxu0 0.0
    %577 = vmatprep.subr.mxu0 0.0
    %578 = vmatpush1.msra.mxu0 0.0
    %579 = vmatprep.subr.mxu0 0.0
    %580 = vmatpush1.msra.mxu0 0.0
    %581 = vmatprep.subr.mxu0 0.0
    %582 = vmatpush1.msra.mxu0 0.0
    %583 = vmatprep.subr.mxu0 0.0
    %584 = vmatpush1.msra.mxu0 0.0
    %585 = vmatprep.subr.mxu0 0.0
    %586 = vmatpush1.msra.mxu0 0.0
    %587 = vmatprep.subr.mxu0 0.0
    %588 = vmatpush1.msra.mxu0 0.0
    %589 = vmatprep.subr.mxu0 0.0
    %590 = vmatpush1.msra.mxu0 0.0
    %591 = vmatprep.subr.mxu0 0.0
    %592 = vmatpush1.msra.mxu0 0.0
    %593 = vmatprep.subr.mxu0 0.0
    %594 = vmatpush1.msra.mxu0 0.0
    %595 = vmatprep.subr.mxu0 0.0
    %v596 = vand.u32 %v110, 4294901760
    %597 = vmatpush1.msra.mxu0 %v596
    %598 = vmatprep.subr.mxu0 0.0
    %v599 = vand.u32 %v109, 4294901760
    %600 = vmatpush1.msra.mxu0 %v599
    %601 = vmatprep.subr.mxu0 0.0
    %v602 = vand.u32 %v108, 4294901760
    %603 = vmatpush1.msra.mxu0 %v602
    %604 = vmatprep.subr.mxu0 0.0
    %v605 = vand.u32 %v107, 4294901760
    %606 = vmatpush1.msra.mxu0 %v605
    %607 = vmatprep.subr.mxu0 0.0
    %608 = vmatpush2.msra.mxu0 0.0
    %609 = vmatprep.subr.mxu0 0.0
    %610 = vmatpush2.msra.mxu0 0.0
    %611 = vmatprep.subr.mxu0 0.0
    %612 = vmatpush2.msra.mxu0 0.0
    %613 = vmatprep.subr.mxu0 0.0
    %614 = vmatpush2.msra.mxu0 0.0
    %615 = vmatprep.subr.mxu0 0.0
    %616 = vmatpush2.msra.mxu0 0.0
    %617 = vmatprep.subr.mxu0 0.0
    %618 = vmatpush2.msra.mxu0 0.0
    %619 = vmatprep.subr.mxu0 0.0
    %620 = vmatpush2.msra.mxu0 0.0
    %621 = vmatprep.subr.mxu0 0.0
    %622 = vmatpush2.msra.mxu0 0.0
    %623 = vmatprep.subr.mxu0 0.0
    %624 = vmatpush2.msra.mxu0 0.0
    %625 = vmatprep.subr.mxu0 0.0
    %626 = vmatpush2.msra.mxu0 0.0
    %627 = vmatprep.subr.mxu0 0.0
    %628 = vmatpush2.msra.mxu0 0.0
    %629 = vmatprep.subr.mxu0 0.0
    %630 = vmatpush2.msra.mxu0 0.0
    %631 = vmatprep.subr.mxu0 0.0
    %632 = vmatpush2.msra.mxu0 0.0
    %633 = vmatprep.subr.mxu0 0.0
    %634 = vmatpush2.msra.mxu0 0.0
    %635 = vmatprep.subr.mxu0 0.0
    %636 = vmatpush2.msra.mxu0 0.0
    %637 = vmatprep.subr.mxu0 0.0
    %638 = vmatpush2.msra.mxu0 0.0
    %639 = vmatprep.mubr.f32.mxu0 0.0
    %v640 = vand.u32 %v119, 4294901760
    %641 = vmatmul.mubr.f32.gmra.mxu0 %v640
    %v642 = vpop.f32.mrf.mxu0
    %v643 = vadd.f32 %v562, %v642
    %v644 = vpop.f32.mrf.mxu0
    %645 = vmatprep.mubr.f32.mxu0 0.0
    %v646 = vand.u32 %v122, 4294901760
    %647 = vmatmul.mubr.f32.gmra.mxu0 %v646
    %v648 = vpop.f32.mrf.mxu0
    %v649 = vadd.f32 %v568, %v648
    %v650 = vpop.f32.mrf.mxu0
    %651 = vdwg.mxu0
    %vm652 = vcmp.gt.f32.partialorder %v643, 0.0
    %vm653 = vcmp.gt.f32.partialorder %v649, 0.0
    %v654 = vmul.f32 %v643, 0.01
    %v655 = vmul.f32 %v649, 0.01
    %v656 = vsel %vm652, %v643, %v654
    %v657 = vsel %vm653, %v649, %v655
    %v658 = vlaneseq
    %v659 = vshrl.u32 %v658, 7
    %vm660 = vcmp.eq.s32.totalorder %v659, 0
    %v661 = vsel %vm660, -1e+30, %v656
    %v662 = vsel %vm660, -1e+30, %v657
    %vm663 = vcmask 269568
    %v664 = vsel %vm663, %v661, -inf
    %v665 = vrot.slane %v664, 4
    %v666 = vmax.f32 %v664, %v665
    %v667 = vrot.slane %v666, 2
    %v668 = vmax.f32 %v666, %v667
    %v669 = vrot.slane %v668, 1
    %v670 = vmax.f32 %v668, %v669
    %v671 = vsel %vm663, %v662, -inf
    %v672 = vrot.slane %v671, 4
    %v673 = vmax.f32 %v671, %v672
    %v674 = vrot.slane %v673, 2
    %v675 = vmax.f32 %v673, %v674
    %v676 = vrot.slane %v675, 1
    %v677 = vmax.f32 %v675, %v676
    %v678 = vsub.f32 %v661, %v670
    %v679 = vsub.f32 %v662, %v677
    %v680 = vmul.f32 %v678, 1.442695
    %v681 = vpow.pop %v680
    %v682 = vmul.f32 %v679, 1.442695
    %v683 = vpow.pop %v682
    %v684 = vsel %vm663, %v681, 0.0
    %v685 = vrot.slane %v684, 4
    %v686 = vadd.f32 %v684, %v685
    %v687 = vrot.slane %v686, 2
    %v688 = vadd.f32 %v686, %v687
    %v689 = vrot.slane %v688, 1
    %v690 = vadd.f32 %v688, %v689
    %v691 = vsel %vm663, %v683, 0.0
    %v692 = vrot.slane %v691, 4
    %v693 = vadd.f32 %v691, %v692
    %v694 = vrot.slane %v693, 2
    %v695 = vadd.f32 %v693, %v694
    %v696 = vrot.slane %v695, 1
    %v697 = vadd.f32 %v695, %v696
    %v698 = vrcp.pop %v690
    %v699 = vmul.f32 %v681, %v698
    %v700 = vrcp.pop %v697
    %v701 = vmul.f32 %v683, %v700
    %v702 = vsel %vm53, %v643, 0.0
    %703 = vadd.xlane.f32.xlu0 %v702
    %v704 = vpop.xlane.xlu0 %703
    %v705 = vsel %vm53, %v649, 0.0
    %706 = vadd.xlane.f32.xlu0 %v705
    %v707 = vpop.xlane.xlu0 %706
    %v708 = vmul.f32 %v704, %v60
    %v709 = vmul.f32 %v707, %v60
    %v710 = vsub.f32 %v643, %v708
    %v711 = vsub.f32 %v649, %v709
    %v712 = vmul.f32 %v710, %v710
    %v713 = vmul.f32 %v711, %v711
    %v714 = vsel %vm53, %v712, 0.0
    %715 = vadd.xlane.f32.xlu0 %v714
    %v716 = vpop.xlane.xlu0 %715
    %v717 = vsel %vm53, %v713, 0.0
    %718 = vadd.xlane.f32.xlu0 %v717
    %v719 = vpop.xlane.xlu0 %718
    %v720 = vmul.f32 %v716, %v60
    %v721 = vmul.f32 %v719, %v60
    %v722 = vadd.f32 %v720, 1e-05
    %v723 = vadd.f32 %v721, 1e-05
    %v724 = vrsqrt.pop %v722
    %v725 = vrsqrt.pop %v723
    %v726 = vmul.f32 %v710, %v724
    %v727 = vmul.f32 %v711, %v725
    %v728 = vmul.f32 %v726, %v85
    %v729 = vmul.f32 %v727, %v85
    %v730 = vadd.f32 %v728, %v93
    %v731 = vadd.f32 %v729, %v93
    %733 = vset.pattern.permute.xlu0 32
    %734 = vperm.xlu0 %733, %v699
    %v735 = vpop.permute.xlu0 %734
    %738 = vset.pattern.permute.xlu0 32
    %739 = vperm.xlu0 %738, %v701
    %v740 = vpop.permute.xlu0 %739
    %v742 = vmul.f32 %v735, %v730
    %v743 = vmul.f32 %v740, %v731
    %v744 = vsel %vm53, %v742, 0.0
    %v745 = vrot.slane %v744, 4
    %v746 = vadd.f32 %v744, %v745
    %v747 = vrot.slane %v746, 2
    %v748 = vadd.f32 %v746, %v747
    %v749 = vrot.slane %v748, 1
    %v750 = vadd.f32 %v748, %v749
    %v751 = vsel %vm53, %v743, 0.0
    %v752 = vrot.slane %v751, 4
    %v753 = vadd.f32 %v751, %v752
    %v754 = vrot.slane %v753, 2
    %v755 = vadd.f32 %v753, %v754
    %v756 = vrot.slane %v755, 1
    %v757 = vadd.f32 %v755, %v756
    %vm758 = vcmp.gt.f32.partialorder %v750, 0.0
    %vm759 = vcmp.gt.f32.partialorder %v757, 0.0
    %v760 = vmul.f32 %v750, 0.01
    %v761 = vmul.f32 %v757, 0.01
    %v762 = vsel %vm758, %v750, %v760
    %v763 = vsel %vm759, %v757, %v761
    %vm766 = vcmask 1041409
    %v767 = vsel %vm766, %v763, %v762
    %vm769 = vcmask 254976
    %770 = vst.msk [vmem:[#allocation7] sm:$0x3] %vm769, %v767
    // Predicated region
    $region30: #{tpu_custom_call.1} parent=1 // pred_check
      _
    $region31: #{tpu_custom_call.1} parent=1 // pred_check_branch
      %772 = sbr.rel (0) target = $region33
    $region32: #{tpu_custom_call.1} parent=1 // pred_region
      %s774 = ssub.s32 32, 32
      %775 = vsyncadd [#allocation4], %s774
      %s777 = sshll.u32 [#allocation7], 4
      %s778 = int_to_ptr.vmem [resolvable:$true] %s777
      %780 = dma.vmem_to_hbm [thread:$0]  %s778, 32, %s5, [#allocation4]
    $region33: #{tpu_custom_call.1} parent=1 // pred_fallthru
      _
    // Predicated region
    $region34: #{tpu_custom_call.1} parent=1 // pred_check
      _
    $region35: #{tpu_custom_call.1} parent=1 // pred_check_branch
      %782 = sbr.rel (0) target = $region37
    $region36: #{tpu_custom_call.1} parent=1 // pred_region
      %783 = dma.done [#allocation4], 32
    $region37: #{tpu_custom_call.1} parent=1 // pred_fallthru
      _
    %784 = vsyncpa [#allocation3], 1
    %785 = vsyncpa [#allocation6], 1
    %786 = vsyncpa [#allocation4], 1

</llo_original>
